<compile_context>
chip_gen: v7x
topology: tpu7x:2x2x1
jax: 0.10.0
libtpu: 0.0.40
codegen_flags: <defaults>
</compile_context>

<pallas_src>
import functools

import jax
import jax.numpy as jnp
from jax.experimental import pallas as pl
from jax.experimental.pallas import tpu as pltpu


def _phase_taps(k, s, pad, phase):
    """Taps (kernel index a, input row/col offset d) feeding output phase `phase`."""
    taps = []
    for a in range(k):
        if (a + phase - pad) % s == 0:
            taps.append((a, (a + phase - pad) // s))
    return taps


def _shift2d(plane, dy, dx, h, w):
    """z[i, j] = plane[i + dy, j + dx], zero-filled outside [0,h) x [0,w)."""
    if dy > 0:
        plane = jnp.concatenate([plane[dy:, :], jnp.zeros((dy, w), plane.dtype)], axis=0)
    elif dy < 0:
        plane = jnp.concatenate([jnp.zeros((-dy, w), plane.dtype), plane[:dy, :]], axis=0)
    if dx > 0:
        plane = jnp.concatenate([plane[:, dx:], jnp.zeros((h, dx), plane.dtype)], axis=1)
    elif dx < 0:
        plane = jnp.concatenate([jnp.zeros((h, -dx), plane.dtype), plane[:, :dx]], axis=1)
    return plane


def _sep_transpose_kernel(x_ref, t_ref, wmix_ref, wdw_ref, o_ref, *,
                          bb, c_in, c_out, h, w, kh, kw, s, pad_t, pad_l):
    # x_ref   : (bb, C_in, H, W)            NCHW input block (VMEM)
    # t_ref   : (s*s*W, s*W_out)            0/1 phase->pixel column-interleave matrix (VMEM)
    # wmix_ref: (C_out*H, C_in*H)           kron(Wpw, I_H): pointwise conv as one matmul (VMEM)
    # wdw_ref : (C_in*kh*kw,)               flipped depthwise taps, flat scalars (SMEM)
    # o_ref   : (bb, C_out, H, s*W_out)     output block; rows are NCHW-contiguous (VMEM)
    s2w = s * s * w
    row_taps = [_phase_taps(kh, s, pad_t, py) for py in range(s)]
    col_taps = [_phase_taps(kw, s, pad_l, px) for px in range(s)]

    for b in range(bb):
        g_rows = []
        for c in range(c_in):
            xc = x_ref[b, c].astype(jnp.float32)              # (H, W)
            shifted = {}

            def get(dy, dx, _xc=xc, _cache=shifted):
                if (dy, dx) not in _cache:
                    _cache[(dy, dx)] = _shift2d(_xc, dy, dx, h, w)
                return _cache[(dy, dx)]

            phases = []
            for py in range(s):
                for px in range(s):
                    acc = None
                    for (a, dy) in row_taps[py]:
                        for (bc, dx) in col_taps[px]:
                            term = get(dy, dx) * wdw_ref[c * kh * kw + a * kw + bc]
                            acc = term if acc is None else acc + term
                    if acc is None:
                        acc = jnp.zeros((h, w), jnp.float32)
                    phases.append(acc)                          # (H, W) phase plane
            g_rows.append(jnp.concatenate(phases, axis=1))      # (H, s*s*W)
        g_all = jnp.concatenate(g_rows, axis=0)                 # (C_in*H, s*s*W)

        # One matmul interleaves all phases into real pixel columns, one matmul does the
        # 1x1 pointwise conv over the (channel, row)-stacked slab.  MXU is otherwise idle.
        d_all = jnp.dot(g_all, t_ref[...], preferred_element_type=jnp.float32)   # (C_in*H, s*W_out)
        o_all = jnp.dot(wmix_ref[...], d_all, preferred_element_type=jnp.float32)  # (C_out*H, s*W_out)
        o_ref[b] = o_all.reshape(c_out, h, s2w).astype(o_ref.dtype)


def conv2d_separable_transpose(x_nchw, w_dw, w_pw, *, stride, padding, output_padding):
    """x_nchw: (N, C_in, H, W); w_dw: (C_in, 1, kH, kW) [torch ConvTranspose2d layout];
    w_pw: (C_out, C_in, 1, 1) [torch 1x1 Conv2d layout]. Returns NCHW output."""
    n, c, h, w = x_nchw.shape
    kh, kw = int(w_dw.shape[2]), int(w_dw.shape[3])
    c_out = int(w_pw.shape[0])
    s, p, op = stride, padding, output_padding
    assert kh - 1 - p >= 0 and kw - 1 - p >= 0, "padding larger than kernel-1 not supported"
    h_out = (h - 1) * s - 2 * p + kh + op
    w_out = (w - 1) * s - 2 * p + kw + op
    # TODO(synk): general shapes (h_out != s*h) need ragged phase planes; not needed for this module config.
    assert h_out == s * h and w_out == s * w, "polyphase kernel requires out = stride * in"
    pad_t, pad_l = kh - 1 - p, kw - 1 - p

    # 0/1 interleave matrix T: column u = (py*s+px)*w + xj of the phase-concatenated slab
    # goes to column z = py*w_out + s*xj + px of the (H, s*W_out) output slab.
    u = jnp.arange(s * s * w)
    py_u, r_u = u // (s * w), u % (s * w)
    px_u, xj_u = r_u // w, r_u % w
    z = jnp.arange(s * w_out)
    py_z, r_z = z // w_out, z % w_out
    xj_z, px_z = r_z // s, r_z % s
    t_mat = ((py_u[:, None] == py_z[None, :])
             & (px_u[:, None] == px_z[None, :])
             & (xj_u[:, None] == xj_z[None, :])).astype(jnp.float32)

    # Pointwise 1x1 conv as a single matmul over the (channel, row)-stacked slab.
    w_mix = jnp.kron(w_pw[:, :, 0, 0].astype(jnp.float32), jnp.eye(h, dtype=jnp.float32))

    # Spatially flipped depthwise taps, flat 1-D for SMEM (index c*kh*kw + a*kw + b).
    wdw_flat = jnp.asarray(w_dw[:, 0, ::-1, ::-1], jnp.float32).reshape(c * kh * kw)

    # Grid shaping: at most 2 "parallel" steps over batch.
    bb = n // 2 if (n >= 2 and n % 2 == 0) else 1
    nb = n // bb

    kern = functools.partial(_sep_transpose_kernel, bb=bb, c_in=c, c_out=c_out,
                             h=h, w=w, kh=kh, kw=kw, s=s, pad_t=pad_t, pad_l=pad_l)

    out = pl.pallas_call(
        kern,
        out_shape=jax.ShapeDtypeStruct((n, c_out, h, s * w_out), x_nchw.dtype),
        grid_spec=pltpu.PrefetchScalarGridSpec(
            num_scalar_prefetch=0,
            grid=(nb,),
            in_specs=[
                pl.BlockSpec((bb, c, h, w), lambda i: (i, 0, 0, 0)),          # x (NCHW)
                pl.BlockSpec((s * s * w, s * w_out), lambda i: (0, 0)),        # T
                pl.BlockSpec((c_out * h, c * h), lambda i: (0, 0)),            # Wmix
                pl.BlockSpec(memory_space=pltpu.MemorySpace.SMEM),             # depthwise taps
            ],
            out_specs=pl.BlockSpec((bb, c_out, h, s * w_out), lambda i: (i, 0, 0, 0)),
        ),
        compiler_params=pltpu.CompilerParams(dimension_semantics=("parallel",)),
    )(x_nchw, t_mat, w_mix, wdw_flat)

    # Free metadata reshape: (n, co, yi, py*w_out + x) is exactly NCHW-contiguous.
    return out.reshape(n, c_out, h_out, w_out)


if __name__ == "__main__":
    key = jax.random.PRNGKey(0)
    k1, k2, k3 = jax.random.split(key, 3)

    # Module config: Conv2dSeparableTranspose(4, 8, kernel_size=3, stride=2,
    #                                         padding=1, output_padding=1, bias=False)
    N, C_in, H, W = 2, 4, 16, 16
    C_out, K, S, P, OP = 8, 3, 2, 1, 1

    x = jax.random.normal(k1, (N, C_in, H, W), jnp.float32)
    w_dw = jax.random.normal(k2, (C_in, 1, K, K), jnp.float32) * 0.1      # ConvTranspose2d weight
    w_pw = jax.random.normal(k3, (C_out, C_in, 1, 1), jnp.float32) * 0.1  # 1x1 Conv2d weight

    out = conv2d_separable_transpose(x, w_dw, w_pw, stride=S, padding=P, output_padding=OP)
    out = jax.block_until_ready(out)

    # independent reference via XLA convolution
    w_dw_flip = w_dw[:, :, ::-1, ::-1]
    ref_dw = jax.lax.conv_general_dilated(
        x, w_dw_flip,
        window_strides=(1, 1),
        padding=((K - 1 - P, K - 1 - P + OP), (K - 1 - P, K - 1 - P + OP)),
        lhs_dilation=(S, S), rhs_dilation=(1, 1),
        dimension_numbers=("NCHW", "OIHW", "NCHW"),
        feature_group_count=C_in)
    ref = jnp.einsum("nchw,oc->nohw", ref_dw, w_pw[:, :, 0, 0])

    h_out = (H - 1) * S - 2 * P + K + OP
    assert out.shape == (N, C_out, h_out, h_out), out.shape
    assert jnp.allclose(out, ref, atol=1e-4, rtol=1e-4)
    print("KERNEL_OK")
</pallas_src>

<mosaic_0001>
module attributes {stable_mosaic.version = 11 : i64} {
  func.func @_sep_transpose_kernel(%arg0: i32, %arg1: memref<1x4x16x16xf32, #tpu.memory_space<vmem>>, %arg2: memref<64x64xf32, #tpu.memory_space<vmem>>, %arg3: memref<128x64xf32, #tpu.memory_space<vmem>>, %arg4: memref<36xf32, #tpu.memory_space<smem>>, %arg5: memref<1x8x16x64xf32, #tpu.memory_space<vmem>>) attributes {dimension_semantics = [#tpu.dimension_semantics<parallel>], iteration_bounds = array<i64: 2>, scalar_prefetch = 0 : i64, scratch_operands = 0 : i64, tpu.core_type = #tpu.core_type<tc>, window_params = [{transform_indices = @transform_0, window_bounds = array<i64: 1, 4, 16, 16>}, {pipeline_mode = #tpu.pipeline_mode<synchronous>, transform_indices = @transform_1, window_bounds = array<i64: 64, 64>}, {pipeline_mode = #tpu.pipeline_mode<synchronous>, transform_indices = @transform_2, window_bounds = array<i64: 128, 64>}, {transform_indices = @transform_3, window_bounds = array<i64: 36>}, {transform_indices = @transform_4, window_bounds = array<i64: 1, 8, 16, 64>}]} {
    %c0 = arith.constant 0 : index
    %c0_0 = arith.constant 0 : index
    %c0_1 = arith.constant 0 : index
    %c0_2 = arith.constant 0 : index
    %0 = vector.load %arg1[%c0, %c0_0, %c0_1, %c0_2] : memref<1x4x16x16xf32, #tpu.memory_space<vmem>>, vector<1x1x16x16xf32>
    %1 = vector.shape_cast %0 : vector<1x1x16x16xf32> to vector<16x16xf32>
    %c4 = arith.constant 4 : index
    %2 = memref.load %arg4[%c4] : memref<36xf32, #tpu.memory_space<smem>>
    %3 = vector.broadcast %2 : f32 to vector<16x16xf32>
    %4 = arith.mulf %1, %3 : vector<16x16xf32>
    %c3 = arith.constant 3 : index
    %5 = memref.load %arg4[%c3] : memref<36xf32, #tpu.memory_space<smem>>
    %6 = vector.broadcast %5 : f32 to vector<16x16xf32>
    %7 = arith.mulf %1, %6 : vector<16x16xf32>
    %8 = vector.extract_strided_slice %1 {offsets = [0, 1], sizes = [16, 15], strides = [1, 1]} : vector<16x16xf32> to vector<16x15xf32>
    %cst = arith.constant 0.000000e+00 : f32
    %9 = vector.broadcast %cst : f32 to vector<16x1xf32>
    %10 = tpu.concatenate %8, %9 in 1 : vector<16x15xf32>, vector<16x1xf32> -> vector<16x16xf32>
    %c5 = arith.constant 5 : index
    %11 = memref.load %arg4[%c5] : memref<36xf32, #tpu.memory_space<smem>>
    %12 = vector.broadcast %11 : f32 to vector<16x16xf32>
    %13 = arith.mulf %10, %12 : vector<16x16xf32>
    %14 = arith.addf %7, %13 : vector<16x16xf32>
    %c1 = arith.constant 1 : index
    %15 = memref.load %arg4[%c1] : memref<36xf32, #tpu.memory_space<smem>>
    %16 = vector.broadcast %15 : f32 to vector<16x16xf32>
    %17 = arith.mulf %1, %16 : vector<16x16xf32>
    %18 = vector.extract_strided_slice %1 {offsets = [1, 0], sizes = [15, 16], strides = [1, 1]} : vector<16x16xf32> to vector<15x16xf32>
    %cst_3 = arith.constant 0.000000e+00 : f32
    %19 = vector.broadcast %cst_3 : f32 to vector<1x16xf32>
    %20 = tpu.concatenate %18, %19 in 0 : vector<15x16xf32>, vector<1x16xf32> -> vector<16x16xf32>
    %c7 = arith.constant 7 : index
    %21 = memref.load %arg4[%c7] : memref<36xf32, #tpu.memory_space<smem>>
    %22 = vector.broadcast %21 : f32 to vector<16x16xf32>
    %23 = arith.mulf %20, %22 : vector<16x16xf32>
    %24 = arith.addf %17, %23 : vector<16x16xf32>
    %c0_4 = arith.constant 0 : index
    %25 = memref.load %arg4[%c0_4] : memref<36xf32, #tpu.memory_space<smem>>
    %26 = vector.broadcast %25 : f32 to vector<16x16xf32>
    %27 = arith.mulf %1, %26 : vector<16x16xf32>
    %c2 = arith.constant 2 : index
    %28 = memref.load %arg4[%c2] : memref<36xf32, #tpu.memory_space<smem>>
    %29 = vector.broadcast %28 : f32 to vector<16x16xf32>
    %30 = arith.mulf %10, %29 : vector<16x16xf32>
    %31 = arith.addf %27, %30 : vector<16x16xf32>
    %c6 = arith.constant 6 : index
    %32 = memref.load %arg4[%c6] : memref<36xf32, #tpu.memory_space<smem>>
    %33 = vector.broadcast %32 : f32 to vector<16x16xf32>
    %34 = arith.mulf %20, %33 : vector<16x16xf32>
    %35 = arith.addf %31, %34 : vector<16x16xf32>
    %36 = vector.extract_strided_slice %1 {offsets = [1, 0], sizes = [15, 16], strides = [1, 1]} : vector<16x16xf32> to vector<15x16xf32>
    %cst_5 = arith.constant 0.000000e+00 : f32
    %37 = vector.broadcast %cst_5 : f32 to vector<1x16xf32>
    %38 = tpu.concatenate %36, %37 in 0 : vector<15x16xf32>, vector<1x16xf32> -> vector<16x16xf32>
    %39 = vector.extract_strided_slice %38 {offsets = [0, 1], sizes = [16, 15], strides = [1, 1]} : vector<16x16xf32> to vector<16x15xf32>
    %cst_6 = arith.constant 0.000000e+00 : f32
    %40 = vector.broadcast %cst_6 : f32 to vector<16x1xf32>
    %41 = tpu.concatenate %39, %40 in 1 : vector<16x15xf32>, vector<16x1xf32> -> vector<16x16xf32>
    %c8 = arith.constant 8 : index
    %42 = memref.load %arg4[%c8] : memref<36xf32, #tpu.memory_space<smem>>
    %43 = vector.broadcast %42 : f32 to vector<16x16xf32>
    %44 = arith.mulf %41, %43 : vector<16x16xf32>
    %45 = arith.addf %35, %44 : vector<16x16xf32>
    %46 = tpu.concatenate %4, %14, %24, %45 in 1 : vector<16x16xf32>, vector<16x16xf32>, vector<16x16xf32>, vector<16x16xf32> -> vector<16x64xf32>
    %c0_7 = arith.constant 0 : index
    %c1_8 = arith.constant 1 : index
    %c0_9 = arith.constant 0 : index
    %c0_10 = arith.constant 0 : index
    %47 = vector.load %arg1[%c0_7, %c1_8, %c0_9, %c0_10] : memref<1x4x16x16xf32, #tpu.memory_space<vmem>>, vector<1x1x16x16xf32>
    %48 = vector.shape_cast %47 : vector<1x1x16x16xf32> to vector<16x16xf32>
    %c13 = arith.constant 13 : index
    %49 = memref.load %arg4[%c13] : memref<36xf32, #tpu.memory_space<smem>>
    %50 = vector.broadcast %49 : f32 to vector<16x16xf32>
    %51 = arith.mulf %48, %50 : vector<16x16xf32>
    %c12 = arith.constant 12 : index
    %52 = memref.load %arg4[%c12] : memref<36xf32, #tpu.memory_space<smem>>
    %53 = vector.broadcast %52 : f32 to vector<16x16xf32>
    %54 = arith.mulf %48, %53 : vector<16x16xf32>
    %55 = vector.extract_strided_slice %48 {offsets = [0, 1], sizes = [16, 15], strides = [1, 1]} : vector<16x16xf32> to vector<16x15xf32>
    %cst_11 = arith.constant 0.000000e+00 : f32
    %56 = vector.broadcast %cst_11 : f32 to vector<16x1xf32>
    %57 = tpu.concatenate %55, %56 in 1 : vector<16x15xf32>, vector<16x1xf32> -> vector<16x16xf32>
    %c14 = arith.constant 14 : index
    %58 = memref.load %arg4[%c14] : memref<36xf32, #tpu.memory_space<smem>>
    %59 = vector.broadcast %58 : f32 to vector<16x16xf32>
    %60 = arith.mulf %57, %59 : vector<16x16xf32>
    %61 = arith.addf %54, %60 : vector<16x16xf32>
    %c10 = arith.constant 10 : index
    %62 = memref.load %arg4[%c10] : memref<36xf32, #tpu.memory_space<smem>>
    %63 = vector.broadcast %62 : f32 to vector<16x16xf32>
    %64 = arith.mulf %48, %63 : vector<16x16xf32>
    %65 = vector.extract_strided_slice %48 {offsets = [1, 0], sizes = [15, 16], strides = [1, 1]} : vector<16x16xf32> to vector<15x16xf32>
    %cst_12 = arith.constant 0.000000e+00 : f32
    %66 = vector.broadcast %cst_12 : f32 to vector<1x16xf32>
    %67 = tpu.concatenate %65, %66 in 0 : vector<15x16xf32>, vector<1x16xf32> -> vector<16x16xf32>
    %c16 = arith.constant 16 : index
    %68 = memref.load %arg4[%c16] : memref<36xf32, #tpu.memory_space<smem>>
    %69 = vector.broadcast %68 : f32 to vector<16x16xf32>
    %70 = arith.mulf %67, %69 : vector<16x16xf32>
    %71 = arith.addf %64, %70 : vector<16x16xf32>
    %c9 = arith.constant 9 : index
    %72 = memref.load %arg4[%c9] : memref<36xf32, #tpu.memory_space<smem>>
    %73 = vector.broadcast %72 : f32 to vector<16x16xf32>
    %74 = arith.mulf %48, %73 : vector<16x16xf32>
    %c11 = arith.constant 11 : index
    %75 = memref.load %arg4[%c11] : memref<36xf32, #tpu.memory_space<smem>>
    %76 = vector.broadcast %75 : f32 to vector<16x16xf32>
    %77 = arith.mulf %57, %76 : vector<16x16xf32>
    %78 = arith.addf %74, %77 : vector<16x16xf32>
    %c15 = arith.constant 15 : index
    %79 = memref.load %arg4[%c15] : memref<36xf32, #tpu.memory_space<smem>>
    %80 = vector.broadcast %79 : f32 to vector<16x16xf32>
    %81 = arith.mulf %67, %80 : vector<16x16xf32>
    %82 = arith.addf %78, %81 : vector<16x16xf32>
    %83 = vector.extract_strided_slice %48 {offsets = [1, 0], sizes = [15, 16], strides = [1, 1]} : vector<16x16xf32> to vector<15x16xf32>
    %cst_13 = arith.constant 0.000000e+00 : f32
    %84 = vector.broadcast %cst_13 : f32 to vector<1x16xf32>
    %85 = tpu.concatenate %83, %84 in 0 : vector<15x16xf32>, vector<1x16xf32> -> vector<16x16xf32>
    %86 = vector.extract_strided_slice %85 {offsets = [0, 1], sizes = [16, 15], strides = [1, 1]} : vector<16x16xf32> to vector<16x15xf32>
    %cst_14 = arith.constant 0.000000e+00 : f32
    %87 = vector.broadcast %cst_14 : f32 to vector<16x1xf32>
    %88 = tpu.concatenate %86, %87 in 1 : vector<16x15xf32>, vector<16x1xf32> -> vector<16x16xf32>
    %c17 = arith.constant 17 : index
    %89 = memref.load %arg4[%c17] : memref<36xf32, #tpu.memory_space<smem>>
    %90 = vector.broadcast %89 : f32 to vector<16x16xf32>
    %91 = arith.mulf %88, %90 : vector<16x16xf32>
    %92 = arith.addf %82, %91 : vector<16x16xf32>
    %93 = tpu.concatenate %51, %61, %71, %92 in 1 : vector<16x16xf32>, vector<16x16xf32>, vector<16x16xf32>, vector<16x16xf32> -> vector<16x64xf32>
    %c0_15 = arith.constant 0 : index
    %c2_16 = arith.constant 2 : index
    %c0_17 = arith.constant 0 : index
    %c0_18 = arith.constant 0 : index
    %94 = vector.load %arg1[%c0_15, %c2_16, %c0_17, %c0_18] : memref<1x4x16x16xf32, #tpu.memory_space<vmem>>, vector<1x1x16x16xf32>
    %95 = vector.shape_cast %94 : vector<1x1x16x16xf32> to vector<16x16xf32>
    %c22 = arith.constant 22 : index
    %96 = memref.load %arg4[%c22] : memref<36xf32, #tpu.memory_space<smem>>
    %97 = vector.broadcast %96 : f32 to vector<16x16xf32>
    %98 = arith.mulf %95, %97 : vector<16x16xf32>
    %c21 = arith.constant 21 : index
    %99 = memref.load %arg4[%c21] : memref<36xf32, #tpu.memory_space<smem>>
    %100 = vector.broadcast %99 : f32 to vector<16x16xf32>
    %101 = arith.mulf %95, %100 : vector<16x16xf32>
    %102 = vector.extract_strided_slice %95 {offsets = [0, 1], sizes = [16, 15], strides = [1, 1]} : vector<16x16xf32> to vector<16x15xf32>
    %cst_19 = arith.constant 0.000000e+00 : f32
    %103 = vector.broadcast %cst_19 : f32 to vector<16x1xf32>
    %104 = tpu.concatenate %102, %103 in 1 : vector<16x15xf32>, vector<16x1xf32> -> vector<16x16xf32>
    %c23 = arith.constant 23 : index
    %105 = memref.load %arg4[%c23] : memref<36xf32, #tpu.memory_space<smem>>
    %106 = vector.broadcast %105 : f32 to vector<16x16xf32>
    %107 = arith.mulf %104, %106 : vector<16x16xf32>
    %108 = arith.addf %101, %107 : vector<16x16xf32>
    %c19 = arith.constant 19 : index
    %109 = memref.load %arg4[%c19] : memref<36xf32, #tpu.memory_space<smem>>
    %110 = vector.broadcast %109 : f32 to vector<16x16xf32>
    %111 = arith.mulf %95, %110 : vector<16x16xf32>
    %112 = vector.extract_strided_slice %95 {offsets = [1, 0], sizes = [15, 16], strides = [1, 1]} : vector<16x16xf32> to vector<15x16xf32>
    %cst_20 = arith.constant 0.000000e+00 : f32
    %113 = vector.broadcast %cst_20 : f32 to vector<1x16xf32>
    %114 = tpu.concatenate %112, %113 in 0 : vector<15x16xf32>, vector<1x16xf32> -> vector<16x16xf32>
    %c25 = arith.constant 25 : index
    %115 = memref.load %arg4[%c25] : memref<36xf32, #tpu.memory_space<smem>>
    %116 = vector.broadcast %115 : f32 to vector<16x16xf32>
    %117 = arith.mulf %114, %116 : vector<16x16xf32>
    %118 = arith.addf %111, %117 : vector<16x16xf32>
    %c18 = arith.constant 18 : index
    %119 = memref.load %arg4[%c18] : memref<36xf32, #tpu.memory_space<smem>>
    %120 = vector.broadcast %119 : f32 to vector<16x16xf32>
    %121 = arith.mulf %95, %120 : vector<16x16xf32>
    %c20 = arith.constant 20 : index
    %122 = memref.load %arg4[%c20] : memref<36xf32, #tpu.memory_space<smem>>
    %123 = vector.broadcast %122 : f32 to vector<16x16xf32>
    %124 = arith.mulf %104, %123 : vector<16x16xf32>
    %125 = arith.addf %121, %124 : vector<16x16xf32>
    %c24 = arith.constant 24 : index
    %126 = memref.load %arg4[%c24] : memref<36xf32, #tpu.memory_space<smem>>
    %127 = vector.broadcast %126 : f32 to vector<16x16xf32>
    %128 = arith.mulf %114, %127 : vector<16x16xf32>
    %129 = arith.addf %125, %128 : vector<16x16xf32>
    %130 = vector.extract_strided_slice %95 {offsets = [1, 0], sizes = [15, 16], strides = [1, 1]} : vector<16x16xf32> to vector<15x16xf32>
    %cst_21 = arith.constant 0.000000e+00 : f32
    %131 = vector.broadcast %cst_21 : f32 to vector<1x16xf32>
    %132 = tpu.concatenate %130, %131 in 0 : vector<15x16xf32>, vector<1x16xf32> -> vector<16x16xf32>
    %133 = vector.extract_strided_slice %132 {offsets = [0, 1], sizes = [16, 15], strides = [1, 1]} : vector<16x16xf32> to vector<16x15xf32>
    %cst_22 = arith.constant 0.000000e+00 : f32
    %134 = vector.broadcast %cst_22 : f32 to vector<16x1xf32>
    %135 = tpu.concatenate %133, %134 in 1 : vector<16x15xf32>, vector<16x1xf32> -> vector<16x16xf32>
    %c26 = arith.constant 26 : index
    %136 = memref.load %arg4[%c26] : memref<36xf32, #tpu.memory_space<smem>>
    %137 = vector.broadcast %136 : f32 to vector<16x16xf32>
    %138 = arith.mulf %135, %137 : vector<16x16xf32>
    %139 = arith.addf %129, %138 : vector<16x16xf32>
    %140 = tpu.concatenate %98, %108, %118, %139 in 1 : vector<16x16xf32>, vector<16x16xf32>, vector<16x16xf32>, vector<16x16xf32> -> vector<16x64xf32>
    %c0_23 = arith.constant 0 : index
    %c3_24 = arith.constant 3 : index
    %c0_25 = arith.constant 0 : index
    %c0_26 = arith.constant 0 : index
    %141 = vector.load %arg1[%c0_23, %c3_24, %c0_25, %c0_26] : memref<1x4x16x16xf32, #tpu.memory_space<vmem>>, vector<1x1x16x16xf32>
    %142 = vector.shape_cast %141 : vector<1x1x16x16xf32> to vector<16x16xf32>
    %c31 = arith.constant 31 : index
    %143 = memref.load %arg4[%c31] : memref<36xf32, #tpu.memory_space<smem>>
    %144 = vector.broadcast %143 : f32 to vector<16x16xf32>
    %145 = arith.mulf %142, %144 : vector<16x16xf32>
    %c30 = arith.constant 30 : index
    %146 = memref.load %arg4[%c30] : memref<36xf32, #tpu.memory_space<smem>>
    %147 = vector.broadcast %146 : f32 to vector<16x16xf32>
    %148 = arith.mulf %142, %147 : vector<16x16xf32>
    %149 = vector.extract_strided_slice %142 {offsets = [0, 1], sizes = [16, 15], strides = [1, 1]} : vector<16x16xf32> to vector<16x15xf32>
    %cst_27 = arith.constant 0.000000e+00 : f32
    %150 = vector.broadcast %cst_27 : f32 to vector<16x1xf32>
    %151 = tpu.concatenate %149, %150 in 1 : vector<16x15xf32>, vector<16x1xf32> -> vector<16x16xf32>
    %c32 = arith.constant 32 : index
    %152 = memref.load %arg4[%c32] : memref<36xf32, #tpu.memory_space<smem>>
    %153 = vector.broadcast %152 : f32 to vector<16x16xf32>
    %154 = arith.mulf %151, %153 : vector<16x16xf32>
    %155 = arith.addf %148, %154 : vector<16x16xf32>
    %c28 = arith.constant 28 : index
    %156 = memref.load %arg4[%c28] : memref<36xf32, #tpu.memory_space<smem>>
    %157 = vector.broadcast %156 : f32 to vector<16x16xf32>
    %158 = arith.mulf %142, %157 : vector<16x16xf32>
    %159 = vector.extract_strided_slice %142 {offsets = [1, 0], sizes = [15, 16], strides = [1, 1]} : vector<16x16xf32> to vector<15x16xf32>
    %cst_28 = arith.constant 0.000000e+00 : f32
    %160 = vector.broadcast %cst_28 : f32 to vector<1x16xf32>
    %161 = tpu.concatenate %159, %160 in 0 : vector<15x16xf32>, vector<1x16xf32> -> vector<16x16xf32>
    %c34 = arith.constant 34 : index
    %162 = memref.load %arg4[%c34] : memref<36xf32, #tpu.memory_space<smem>>
    %163 = vector.broadcast %162 : f32 to vector<16x16xf32>
    %164 = arith.mulf %161, %163 : vector<16x16xf32>
    %165 = arith.addf %158, %164 : vector<16x16xf32>
    %c27 = arith.constant 27 : index
    %166 = memref.load %arg4[%c27] : memref<36xf32, #tpu.memory_space<smem>>
    %167 = vector.broadcast %166 : f32 to vector<16x16xf32>
    %168 = arith.mulf %142, %167 : vector<16x16xf32>
    %c29 = arith.constant 29 : index
    %169 = memref.load %arg4[%c29] : memref<36xf32, #tpu.memory_space<smem>>
    %170 = vector.broadcast %169 : f32 to vector<16x16xf32>
    %171 = arith.mulf %151, %170 : vector<16x16xf32>
    %172 = arith.addf %168, %171 : vector<16x16xf32>
    %c33 = arith.constant 33 : index
    %173 = memref.load %arg4[%c33] : memref<36xf32, #tpu.memory_space<smem>>
    %174 = vector.broadcast %173 : f32 to vector<16x16xf32>
    %175 = arith.mulf %161, %174 : vector<16x16xf32>
    %176 = arith.addf %172, %175 : vector<16x16xf32>
    %177 = vector.extract_strided_slice %142 {offsets = [1, 0], sizes = [15, 16], strides = [1, 1]} : vector<16x16xf32> to vector<15x16xf32>
    %cst_29 = arith.constant 0.000000e+00 : f32
    %178 = vector.broadcast %cst_29 : f32 to vector<1x16xf32>
    %179 = tpu.concatenate %177, %178 in 0 : vector<15x16xf32>, vector<1x16xf32> -> vector<16x16xf32>
    %180 = vector.extract_strided_slice %179 {offsets = [0, 1], sizes = [16, 15], strides = [1, 1]} : vector<16x16xf32> to vector<16x15xf32>
    %cst_30 = arith.constant 0.000000e+00 : f32
    %181 = vector.broadcast %cst_30 : f32 to vector<16x1xf32>
    %182 = tpu.concatenate %180, %181 in 1 : vector<16x15xf32>, vector<16x1xf32> -> vector<16x16xf32>
    %c35 = arith.constant 35 : index
    %183 = memref.load %arg4[%c35] : memref<36xf32, #tpu.memory_space<smem>>
    %184 = vector.broadcast %183 : f32 to vector<16x16xf32>
    %185 = arith.mulf %182, %184 : vector<16x16xf32>
    %186 = arith.addf %176, %185 : vector<16x16xf32>
    %187 = tpu.concatenate %145, %155, %165, %186 in 1 : vector<16x16xf32>, vector<16x16xf32>, vector<16x16xf32>, vector<16x16xf32> -> vector<16x64xf32>
    %188 = tpu.concatenate %46, %93, %140, %187 in 0 : vector<16x64xf32>, vector<16x64xf32>, vector<16x64xf32>, vector<16x64xf32> -> vector<64x64xf32>
    %c0_31 = arith.constant 0 : index
    %c0_32 = arith.constant 0 : index
    %189 = vector.load %arg2[%c0_31, %c0_32] : memref<64x64xf32, #tpu.memory_space<vmem>>, vector<64x64xf32>
    %cst_33 = arith.constant dense<0.000000e+00> : vector<64x64xf32>
    %190 = tpu.matmul %188, %189, %cst_33 {dimension_numbers = #tpu.dot_dimension_numbers<[1], [0], [0], [1], [0, 0, 1, 1], [], []>} : vector<64x64xf32>, vector<64x64xf32>, vector<64x64xf32> -> vector<64x64xf32>
    %c0_34 = arith.constant 0 : index
    %c0_35 = arith.constant 0 : index
    %191 = vector.load %arg3[%c0_34, %c0_35] : memref<128x64xf32, #tpu.memory_space<vmem>>, vector<128x64xf32>
    %cst_36 = arith.constant dense<0.000000e+00> : vector<128x64xf32>
    %192 = tpu.matmul %191, %190, %cst_36 {dimension_numbers = #tpu.dot_dimension_numbers<[1], [0], [0], [1], [0, 0, 1, 1], [], []>} : vector<128x64xf32>, vector<64x64xf32>, vector<128x64xf32> -> vector<128x64xf32>
    %193 = vector.shape_cast %192 : vector<128x64xf32> to vector<8x16x64xf32>
    %c0_37 = arith.constant 0 : index
    %c0_38 = arith.constant 0 : index
    %c0_39 = arith.constant 0 : index
    %c0_40 = arith.constant 0 : index
    %194 = vector.load %arg5[%c0_37, %c0_38, %c0_39, %c0_40] : memref<1x8x16x64xf32, #tpu.memory_space<vmem>>, vector<1x8x16x64xf32>
    %195 = vector.shape_cast %194 : vector<1x8x16x64xf32> to vector<8x16x64xf32>
    %196 = vector.shape_cast %193 : vector<8x16x64xf32> to vector<1x8x16x64xf32>
    tpu.vector_store %arg5[%c0_37, %c0_38, %c0_39, %c0_40], %196 {strides = array<i32>} : memref<1x8x16x64xf32, #tpu.memory_space<vmem>>, vector<1x8x16x64xf32>,
    return
  }
  func.func @transform_0(%arg0: i32) -> (i32, i32, i32, i32) {
    %c0_i32 = arith.constant 0 : i32
    %c0_i32_0 = arith.constant 0 : i32
    %c0_i32_1 = arith.constant 0 : i32
    %c0_i32_2 = arith.constant 0 : i32
    return %arg0, %c0_i32, %c0_i32_0, %c0_i32_1 : i32, i32, i32, i32
  }
  func.func @transform_1(%arg0: i32) -> (i32, i32) {
    %c0_i32 = arith.constant 0 : i32
    %c0_i32_0 = arith.constant 0 : i32
    %c0_i32_1 = arith.constant 0 : i32
    return %c0_i32, %c0_i32_0 : i32, i32
  }
  func.func @transform_2(%arg0: i32) -> (i32, i32) {
    %c0_i32 = arith.constant 0 : i32
    %c0_i32_0 = arith.constant 0 : i32
    %c0_i32_1 = arith.constant 0 : i32
    return %c0_i32, %c0_i32_0 : i32, i32
  }
  func.func @transform_3(%arg0: i32) -> i32 {
    %c0_i32 = arith.constant 0 : i32
    %c0_i32_0 = arith.constant 0 : i32
    return %c0_i32 : i32
  }
  func.func @transform_4(%arg0: i32) -> (i32, i32, i32, i32) {
    %c0_i32 = arith.constant 0 : i32
    %c0_i32_0 = arith.constant 0 : i32
    %c0_i32_1 = arith.constant 0 : i32
    %c0_i32_2 = arith.constant 0 : i32
    return %arg0, %c0_i32, %c0_i32_0, %c0_i32_1 : i32, i32, i32, i32
  }
}

</mosaic_0001>

<llo_original>
// kernel: tpu_custom_call.1
$region0: #{tpu_custom_call.1}
  #allocation0 [shape = 'u32[]', space=smem, size = 0x4, offset = 0x4, fixed_abs, tag = 'smem constant byte address 0x4 - core index']
  #allocation1 [shape = 'u32[144,128]{1,0:T(1,128)}', space=vmem, size = 0x12000, scoped, tag = 'internal scratch']
  %s0 = inlined_call_operand.vmem [shape: f32[2,4,16,16], index: 0, kind: input, shape index: {}]
  %s1 = inlined_call_operand.vmem [shape: f32[64,64], index: 1, kind: input, shape index: {}]
  %s2 = inlined_call_operand.vmem [shape: f32[128,64], index: 2, kind: input, shape index: {}]
  %s3 = inlined_call_operand.vmem [shape: f32[36], index: 3, kind: input, shape index: {}]
  %s4 = inlined_call_operand.hbm [shape: f32[2,8,16,64], index: 4, kind: output, shape index: {}]
  %s5 = sld [smem:[#allocation0]]
  $region53: #{tpu_custom_call.1} parent=0
    _
  %s7 = ssub.s32 1, %s5
  %s8 = scalar_select 0, %s7, %s5
  $region1: #{tpu_custom_call.1} parent=0
    #allocation2 [shape = 'u8[512]{0}', space=smem, size = 0x200, scoped, tag = 'input window, operand 3, single buffered']
    #allocation3 [shape = 's32[2]{0}', space=sflag, size = 0x8, scoped, tag = 'scoped memory for tpu_custom_call.1']
    #allocation4 [shape = 's32[2]{0}', space=sflag, size = 0x8, scoped, tag = 'scoped memory for tpu_custom_call.1']
    #allocation5 [shape = 'u8[131072]{0}', space=vmem, size = 0x20000, scoped, tag = 'output window, operand 0']
    %9 = vsyncpa [#allocation4], 0
    %10 = vsyncpa [#allocation3], 0
    %s11 = scalar_lea.sflag [#allocation3], 1
    %12 = vsyncpa %s11, 0
    loop: start=0, step=1, limit=4
    $region2: #{tpu_custom_call.1} parent=1 // loop_pre_header
      _
    $region3: #{tpu_custom_call.1} parent=1 // loop_header
      %s14 = sphi 0, %s18
      %p15 = scmp.ge.s32.totalorder %s14, 4
      %s24 = sphi 0, %s26
      %s27 = sphi 0, %s24
      %s28 = sphi 0, %s27
      %s44 = sphi 0, %s28
      %s48 = sphi 0, %s48
      %s50 = sphi 0, %s48
      %s51 = sphi 0, %s50
      %s65 = sphi 0, %s51
      %s69 = sphi 0, %s69
      %s71 = sphi 0, %s69
      %s72 = sphi 0, %s71
      %s86 = sphi 0, %s72
      %s90 = sphi 0, %s90
      %s92 = sphi 0, %s90
      %s93 = sphi 0, %s92
      %s107 = sphi 0, %s93
      %s113 = sphi 0, %s115
      %s116 = sphi 0, %s113
      %s117 = sphi 0, %s116
      %s133 = sphi 0, %s117
    $region4: #{tpu_custom_call.1} parent=1 // loop_header_branch
      %17 = sbr.rel (%p15) target = $region8
    $region5: #{tpu_custom_call.1} parent=1 // loop_body
      %s19 = ssub.s32 %s14, 1
      %s20 = ssub.s32 %s14, 2
      %s21 = sadd.s32 %s14, 1
      %s22 = ssub.s32 %s14, %s21
      %p23 = scmp.eq.s32.totalorder %s22, 0
      %s25 = sadd.s32 %s24, 1
      %s26 = scalar_select %p23, %s24, %s25
      %p29 = pneg %p23
      %p30 = scmp.eq.s32.totalorder %s14, 1
      %p31 = por %p29, %p30
      %p32 = scmp.ne.s32.totalorder %s24, %s27
      %p33 = scmp.eq.s32.totalorder %s14, 0
      %p34 = por %p32, %p33
      %p35 = scmp.ne.s32.totalorder %s24, %s27
      %p36 = scmp.eq.s32.totalorder %s19, 1
      %p37 = por %p35, %p36
      %p38 = scmp.ne.s32.totalorder %s27, %s28
      %p39 = scmp.eq.s32.totalorder %s19, 0
      %p40 = por %p38, %p39
      %p41 = scmp.ne.s32.totalorder %s27, %s28
      %p42 = scmp.eq.s32.totalorder %s20, 1
      %p43 = por %p41, %p42
      %p45 = scmp.ne.s32.totalorder %s28, %s44
      %p46 = scmp.eq.s32.totalorder %s20, 0
      %p47 = por %p45, %p46
      %s49 = sadd.s32 %s48, 1
      %p52 = scmp.eq.s32.totalorder %s14, 1
      %p53 = scmp.ne.s32.totalorder %s48, %s50
      %p54 = scmp.eq.s32.totalorder %s14, 0
      %p55 = por %p53, %p54
      %p56 = scmp.ne.s32.totalorder %s48, %s50
      %p57 = scmp.eq.s32.totalorder %s19, 1
      %p58 = por %p56, %p57
      %p59 = scmp.ne.s32.totalorder %s50, %s51
      %p60 = scmp.eq.s32.totalorder %s19, 0
      %p61 = por %p59, %p60
      %p62 = scmp.ne.s32.totalorder %s50, %s51
      %p63 = scmp.eq.s32.totalorder %s20, 1
      %p64 = por %p62, %p63
      %p66 = scmp.ne.s32.totalorder %s51, %s65
      %p67 = scmp.eq.s32.totalorder %s20, 0
      %p68 = por %p66, %p67
      %s70 = sadd.s32 %s69, 1
      %p73 = scmp.eq.s32.totalorder %s14, 1
      %p74 = scmp.ne.s32.totalorder %s69, %s71
      %p75 = scmp.eq.s32.totalorder %s14, 0
      %p76 = por %p74, %p75
      %p77 = scmp.ne.s32.totalorder %s69, %s71
      %p78 = scmp.eq.s32.totalorder %s19, 1
      %p79 = por %p77, %p78
      %p80 = scmp.ne.s32.totalorder %s71, %s72
      %p81 = scmp.eq.s32.totalorder %s19, 0
      %p82 = por %p80, %p81
      %p83 = scmp.ne.s32.totalorder %s71, %s72
      %p84 = scmp.eq.s32.totalorder %s20, 1
      %p85 = por %p83, %p84
      %p87 = scmp.ne.s32.totalorder %s72, %s86
      %p88 = scmp.eq.s32.totalorder %s20, 0
      %p89 = por %p87, %p88
      %s91 = sadd.s32 %s90, 1
      %p94 = scmp.eq.s32.totalorder %s14, 1
      %p95 = scmp.ne.s32.totalorder %s90, %s92
      %p96 = scmp.eq.s32.totalorder %s14, 0
      %p97 = por %p95, %p96
      %p98 = scmp.ne.s32.totalorder %s90, %s92
      %p99 = scmp.eq.s32.totalorder %s19, 1
      %p100 = por %p98, %p99
      %p101 = scmp.ne.s32.totalorder %s92, %s93
      %p102 = scmp.eq.s32.totalorder %s19, 0
      %p103 = por %p101, %p102
      %p104 = scmp.ne.s32.totalorder %s92, %s93
      %p105 = scmp.eq.s32.totalorder %s20, 1
      %p106 = por %p104, %p105
      %p108 = scmp.ne.s32.totalorder %s93, %s107
      %p109 = scmp.eq.s32.totalorder %s20, 0
      %p110 = por %p108, %p109
      %s111 = ssub.s32 %s14, %s21
      %p112 = scmp.eq.s32.totalorder %s111, 0
      %s114 = sadd.s32 %s113, 1
      %s115 = scalar_select %p112, %s113, %s114
      %p118 = pneg %p112
      %p119 = scmp.eq.s32.totalorder %s14, 1
      %p120 = por %p118, %p119
      %p121 = scmp.ne.s32.totalorder %s113, %s116
      %p122 = scmp.eq.s32.totalorder %s14, 0
      %p123 = por %p121, %p122
      %p124 = scmp.ne.s32.totalorder %s113, %s116
      %p125 = scmp.eq.s32.totalorder %s19, 1
      %p126 = por %p124, %p125
      %p127 = scmp.ne.s32.totalorder %s116, %s117
      %p128 = scmp.eq.s32.totalorder %s19, 0
      %p129 = por %p127, %p128
      %p130 = scmp.ne.s32.totalorder %s116, %s117
      %p131 = scmp.eq.s32.totalorder %s20, 1
      %p132 = por %p130, %p131
      %p134 = scmp.ne.s32.totalorder %s117, %s133
      %p135 = scmp.eq.s32.totalorder %s20, 0
      %p136 = por %p134, %p135
      %p137 = scmp.le.s32.totalorder 1, %s14
      %p138 = scmp.lt.s32.totalorder %s14, 3
      %p139 = pnand %p137, %p138
      %p140 = pneg %p139
      // Predicated region
      $region9: #{tpu_custom_call.1} parent=5 // pred_check
        _
      $region10: #{tpu_custom_call.1} parent=5 // pred_check_branch
        %142 = sbr.rel (%p139) target = $region12
      $region11: #{tpu_custom_call.1} parent=5 // pred_region
        %s143 = ssub.s32 %s14, 1
        // Predicated region
        $region13: #{tpu_custom_call.1} parent=11 // pred_check
          %p144 = pneg %p61
        $region14: #{tpu_custom_call.1} parent=11 // pred_check_branch
          %146 = sbr.rel (%p144) target = $region16
        $region15: #{tpu_custom_call.1} parent=11 // pred_region
          _
        $region16: #{tpu_custom_call.1} parent=11 // pred_fallthru
          _
        // Predicated region
        $region17: #{tpu_custom_call.1} parent=11 // pred_check
          %p147 = pneg %p82
        $region18: #{tpu_custom_call.1} parent=11 // pred_check_branch
          %149 = sbr.rel (%p147) target = $region20
        $region19: #{tpu_custom_call.1} parent=11 // pred_region
          _
        $region20: #{tpu_custom_call.1} parent=11 // pred_fallthru
          _
        // Predicated region
        $region21: #{tpu_custom_call.1} parent=11 // pred_check
          %p150 = pneg %p103
        $region22: #{tpu_custom_call.1} parent=11 // pred_check_branch
          %152 = sbr.rel (%p150) target = $region24
        $region23: #{tpu_custom_call.1} parent=11 // pred_region
          %s154 = ssub.s32 16, 16
          %155 = vsyncadd [#allocation4], %s154
          %s157 = sshll.u32 %s3, 4
          %s158 = int_to_ptr.vmem [resolvable:$true] %s157
          %160 = dma.vmem_to_smem %s158, 16, [#allocation2], [#allocation4]
        $region24: #{tpu_custom_call.1} parent=11 // pred_fallthru
          _
      $region12: #{tpu_custom_call.1} parent=5 // pred_fallthru
        _
      %p161 = scmp.lt.s32.totalorder %s14, 2
      // Predicated region
      $region25: #{tpu_custom_call.1} parent=5 // pred_check
        %p162 = pneg %p161
      $region26: #{tpu_custom_call.1} parent=5 // pred_check_branch
        %164 = sbr.rel (%p162) target = $region28
      $region27: #{tpu_custom_call.1} parent=5 // pred_region
        // Predicated region
        $region29: #{tpu_custom_call.1} parent=27 // pred_check
          %p165 = pneg %p34
        $region30: #{tpu_custom_call.1} parent=27 // pred_check_branch
          %167 = sbr.rel (%p165) target = $region32
        $region31: #{tpu_custom_call.1} parent=27 // pred_region
          %p168 = scmp.lt.s32.totalorder %s14, 1
          %s169 = scalar_select %p168, %s14, 1
          %s170 = smul.addr %s169, 8
          %s171 = smul.addr %s170, 8
          %s172 = scalar_lea.vmem %s0, %s171
        $region32: #{tpu_custom_call.1} parent=27 // pred_fallthru
          _
      $region28: #{tpu_custom_call.1} parent=5 // pred_fallthru
        _
      %p173 = scmp.le.s32.totalorder 1, %s14
      %p174 = scmp.lt.s32.totalorder %s14, 3
      %p175 = pnand %p173, %p174
      %p176 = pneg %p175
      // Predicated region
      $region33: #{tpu_custom_call.1} parent=5 // pred_check
        _
      $region34: #{tpu_custom_call.1} parent=5 // pred_check_branch
        %178 = sbr.rel (%p175) target = $region36
      $region35: #{tpu_custom_call.1} parent=5 // pred_region
        %s179 = ssub.s32 %s14, 1
        // Predicated region
        $region37: #{tpu_custom_call.1} parent=35 // pred_check
          %p180 = pneg %p103
        $region38: #{tpu_custom_call.1} parent=35 // pred_check_branch
          %182 = sbr.rel (%p180) target = $region40
        $region39: #{tpu_custom_call.1} parent=35 // pred_region
          %183 = dma.done [#allocation4], 16
        $region40: #{tpu_custom_call.1} parent=35 // pred_fallthru
          _
        %184 = sfence
        %p185 = scmp.lt.s32.totalorder %s19, 1
        %s186 = scalar_select %p185, %s19, 1
        %s187 = smul.addr %s186, 8
        %s188 = smul.addr %s187, 8
        %s189 = scalar_lea.vmem %s0, %s188
        %p190 = pneg %p40
        %p191 = pneg %p37
        %p192 = pneg %p61
        %p193 = pneg %p58
        %p194 = pneg %p82
        %p195 = pneg %p79
        %p196 = pneg %p103
        %p197 = pneg %p100
        %p198 = pneg %p129
        %p199 = pneg %p126
        %s200 = sand.u32 %s116, 1
        %s201 = scalar_lea.sflag [#allocation3], %s200
        %s202 = sand.u32 %s116, 1
        %s203 = smul.addr %s202, 128
        %s204 = scalar_lea.vmem [#allocation5], %s203
        %p205 = scmp.lt.s32.totalorder %s19, 1
        %s206 = scalar_select %p205, %s19, 1
        %s207 = smul.addr %s206, 8
        %s208 = smul.addr %s207, 8
        %s209 = scalar_lea.vmem %s0, %s208
        %v210 = vld [vmem:[%s209] sm:$0xff]
        %v211 = vld [vmem:[%s209 + $0x8] sm:$0xff]
        %s212 = sld [smem:[#allocation2 + $0x4]]
        %v213 = vstv %s212
        %v214 = vmul.f32 %v210, %v213
        %v215 = vmul.f32 %v211, %v213
        %s216 = sld [smem:[#allocation2 + $0x3]]
        %v217 = vstv %s216
        %v218 = vmul.f32 %v210, %v217
        %v219 = vmul.f32 %v211, %v217
        %222 = vrot.lane.b32.xlu0 %v210, 127
        %v223 = vpop.permute.xlu0 %222
        %224 = vrot.lane.b32.xlu0 %v211, 127
        %v225 = vpop.permute.xlu0 %224
        %vm228 = vcmask 121856
        %v229 = vsel %vm228, %v223, 0.0
        %v230 = vsel %vm228, %v225, 0.0
        %s231 = sld [smem:[#allocation2 + $0x5]]
        %v232 = vstv %s231
        %v233 = vmul.f32 %v229, %v232
        %v234 = vmul.f32 %v230, %v232
        %v235 = vadd.f32 %v218, %v233
        %v236 = vadd.f32 %v219, %v234
        %s237 = sld [smem:[#allocation2 + $0x1]]
        %v238 = vstv %s237
        %v239 = vmul.f32 %v210, %v238
        %v240 = vmul.f32 %v211, %v238
        %vm241 = vcmask 1046528
        %v242 = vrot.slane %v210, 1
        %v243 = vrot.slane %v211, 1
        %v244 = vsel %vm241, %v242, %v243
        %v247 = vsel %vm241, %v243, 0.0
        %s248 = sld [smem:[#allocation2 + $0x7]]
        %v249 = vstv %s248
        %v250 = vmul.f32 %v244, %v249
        %v251 = vmul.f32 %v247, %v249
        %v252 = vadd.f32 %v239, %v250
        %v253 = vadd.f32 %v240, %v251
        %s254 = sld [smem:[#allocation2]]
        %v255 = vstv %s254
        %v256 = vmul.f32 %v210, %v255
        %v257 = vmul.f32 %v211, %v255
        %s258 = sld [smem:[#allocation2 + $0x2]]
        %v259 = vstv %s258
        %v260 = vmul.f32 %v229, %v259
        %v261 = vmul.f32 %v230, %v259
        %v262 = vadd.f32 %v256, %v260
        %v263 = vadd.f32 %v257, %v261
        %s264 = sld [smem:[#allocation2 + $0x6]]
        %v265 = vstv %s264
        %v266 = vmul.f32 %v244, %v265
        %v267 = vmul.f32 %v247, %v265
        %v268 = vadd.f32 %v262, %v266
        %v269 = vadd.f32 %v263, %v267
        %271 = vrot.lane.b32.xlu0 %v244, 127
        %v272 = vpop.permute.xlu0 %271
        %273 = vrot.lane.b32.xlu0 %v247, 127
        %v274 = vpop.permute.xlu0 %273
        %v277 = vsel %vm228, %v272, 0.0
        %v278 = vsel %vm228, %v274, 0.0
        %s279 = sld [smem:[#allocation2 + $0x8]]
        %v280 = vstv %s279
        %v281 = vmul.f32 %v277, %v280
        %v282 = vmul.f32 %v278, %v280
        %v283 = vadd.f32 %v268, %v281
        %v284 = vadd.f32 %v269, %v282
        %287 = vrot.lane.b32.xlu0 %v235, 16
        %v288 = vpop.permute.xlu0 %287
        %289 = vrot.lane.b32.xlu0 %v236, 16
        %v290 = vpop.permute.xlu0 %289
        %295 = vrot.lane.b32.xlu0 %v252, 32
        %v296 = vpop.permute.xlu0 %295
        %297 = vrot.lane.b32.xlu0 %v253, 32
        %v298 = vpop.permute.xlu0 %297
        %303 = vrot.lane.b32.xlu0 %v283, 48
        %v304 = vpop.permute.xlu0 %303
        %305 = vrot.lane.b32.xlu0 %v284, 48
        %v306 = vpop.permute.xlu0 %305
        %vm309 = vcmask 130048
        %v310 = vsel %vm309, %v214, %v288
        %v311 = vsel %vm309, %v215, %v290
        %vm312 = vcmask 261120
        %v313 = vsel %vm312, %v310, %v296
        %v314 = vsel %vm312, %v311, %v298
        %vm315 = vcmask 392192
        %v316 = vsel %vm315, %v313, %v304
        %v317 = vsel %vm315, %v314, %v306
        %s318 = scalar_lea.vmem %s209, 16
        %v319 = vld [vmem:[%s318] sm:$0xff]
        %v320 = vld [vmem:[%s318 + $0x8] sm:$0xff]
        %s321 = sld [smem:[#allocation2 + $0xd]]
        %v322 = vstv %s321
        %v323 = vmul.f32 %v319, %v322
        %v324 = vmul.f32 %v320, %v322
        %s325 = sld [smem:[#allocation2 + $0xc]]
        %v326 = vstv %s325
        %v327 = vmul.f32 %v319, %v326
        %v328 = vmul.f32 %v320, %v326
        %331 = vrot.lane.b32.xlu0 %v319, 127
        %v332 = vpop.permute.xlu0 %331
        %333 = vrot.lane.b32.xlu0 %v320, 127
        %v334 = vpop.permute.xlu0 %333
        %v337 = vsel %vm228, %v332, 0.0
        %v338 = vsel %vm228, %v334, 0.0
        %s339 = sld [smem:[#allocation2 + $0xe]]
        %v340 = vstv %s339
        %v341 = vmul.f32 %v337, %v340
        %v342 = vmul.f32 %v338, %v340
        %v343 = vadd.f32 %v327, %v341
        %v344 = vadd.f32 %v328, %v342
        %s345 = sld [smem:[#allocation2 + $0xa]]
        %v346 = vstv %s345
        %v347 = vmul.f32 %v319, %v346
        %v348 = vmul.f32 %v320, %v346
        %v349 = vrot.slane %v319, 1
        %v350 = vrot.slane %v320, 1
        %v351 = vsel %vm241, %v349, %v350
        %v354 = vsel %vm241, %v350, 0.0
        %s355 = sld [smem:[#allocation2 + $0x10]]
        %v356 = vstv %s355
        %v357 = vmul.f32 %v351, %v356
        %v358 = vmul.f32 %v354, %v356
        %v359 = vadd.f32 %v347, %v357
        %v360 = vadd.f32 %v348, %v358
        %s361 = sld [smem:[#allocation2 + $0x9]]
        %v362 = vstv %s361
        %v363 = vmul.f32 %v319, %v362
        %v364 = vmul.f32 %v320, %v362
        %s365 = sld [smem:[#allocation2 + $0xb]]
        %v366 = vstv %s365
        %v367 = vmul.f32 %v337, %v366
        %v368 = vmul.f32 %v338, %v366
        %v369 = vadd.f32 %v363, %v367
        %v370 = vadd.f32 %v364, %v368
        %s371 = sld [smem:[#allocation2 + $0xf]]
        %v372 = vstv %s371
        %v373 = vmul.f32 %v351, %v372
        %v374 = vmul.f32 %v354, %v372
        %v375 = vadd.f32 %v369, %v373
        %v376 = vadd.f32 %v370, %v374
        %378 = vrot.lane.b32.xlu0 %v351, 127
        %v379 = vpop.permute.xlu0 %378
        %380 = vrot.lane.b32.xlu0 %v354, 127
        %v381 = vpop.permute.xlu0 %380
        %v384 = vsel %vm228, %v379, 0.0
        %v385 = vsel %vm228, %v381, 0.0
        %s386 = sld [smem:[#allocation2 + $0x11]]
        %v387 = vstv %s386
        %v388 = vmul.f32 %v384, %v387
        %v389 = vmul.f32 %v385, %v387
        %v390 = vadd.f32 %v375, %v388
        %v391 = vadd.f32 %v376, %v389
        %394 = vrot.lane.b32.xlu0 %v343, 16
        %v395 = vpop.permute.xlu0 %394
        %396 = vrot.lane.b32.xlu0 %v344, 16
        %v397 = vpop.permute.xlu0 %396
        %402 = vrot.lane.b32.xlu0 %v359, 32
        %v403 = vpop.permute.xlu0 %402
        %404 = vrot.lane.b32.xlu0 %v360, 32
        %v405 = vpop.permute.xlu0 %404
        %410 = vrot.lane.b32.xlu0 %v390, 48
        %v411 = vpop.permute.xlu0 %410
        %412 = vrot.lane.b32.xlu0 %v391, 48
        %v413 = vpop.permute.xlu0 %412
        %v416 = vsel %vm309, %v323, %v395
        %v417 = vsel %vm309, %v324, %v397
        %v418 = vsel %vm312, %v416, %v403
        %v419 = vsel %vm312, %v417, %v405
        %v420 = vsel %vm315, %v418, %v411
        %v421 = vsel %vm315, %v419, %v413
        %s422 = scalar_lea.vmem %s209, 32
        %v423 = vld [vmem:[%s422] sm:$0xff]
        %v424 = vld [vmem:[%s422 + $0x8] sm:$0xff]
        %s425 = sld [smem:[#allocation2 + $0x16]]
        %v426 = vstv %s425
        %v427 = vmul.f32 %v423, %v426
        %v428 = vmul.f32 %v424, %v426
        %s429 = sld [smem:[#allocation2 + $0x15]]
        %v430 = vstv %s429
        %v431 = vmul.f32 %v423, %v430
        %v432 = vmul.f32 %v424, %v430
        %435 = vrot.lane.b32.xlu0 %v423, 127
        %v436 = vpop.permute.xlu0 %435
        %437 = vrot.lane.b32.xlu0 %v424, 127
        %v438 = vpop.permute.xlu0 %437
        %v441 = vsel %vm228, %v436, 0.0
        %v442 = vsel %vm228, %v438, 0.0
        %s443 = sld [smem:[#allocation2 + $0x17]]
        %v444 = vstv %s443
        %v445 = vmul.f32 %v441, %v444
        %v446 = vmul.f32 %v442, %v444
        %v447 = vadd.f32 %v431, %v445
        %v448 = vadd.f32 %v432, %v446
        %s449 = sld [smem:[#allocation2 + $0x13]]
        %v450 = vstv %s449
        %v451 = vmul.f32 %v423, %v450
        %v452 = vmul.f32 %v424, %v450
        %v453 = vrot.slane %v423, 1
        %v454 = vrot.slane %v424, 1
        %v455 = vsel %vm241, %v453, %v454
        %v458 = vsel %vm241, %v454, 0.0
        %s459 = sld [smem:[#allocation2 + $0x19]]
        %v460 = vstv %s459
        %v461 = vmul.f32 %v455, %v460
        %v462 = vmul.f32 %v458, %v460
        %v463 = vadd.f32 %v451, %v461
        %v464 = vadd.f32 %v452, %v462
        %s465 = sld [smem:[#allocation2 + $0x12]]
        %v466 = vstv %s465
        %v467 = vmul.f32 %v423, %v466
        %v468 = vmul.f32 %v424, %v466
        %s469 = sld [smem:[#allocation2 + $0x14]]
        %v470 = vstv %s469
        %v471 = vmul.f32 %v441, %v470
        %v472 = vmul.f32 %v442, %v470
        %v473 = vadd.f32 %v467, %v471
        %v474 = vadd.f32 %v468, %v472
        %s475 = sld [smem:[#allocation2 + $0x18]]
        %v476 = vstv %s475
        %v477 = vmul.f32 %v455, %v476
        %v478 = vmul.f32 %v458, %v476
        %v479 = vadd.f32 %v473, %v477
        %v480 = vadd.f32 %v474, %v478
        %482 = vrot.lane.b32.xlu0 %v455, 127
        %v483 = vpop.permute.xlu0 %482
        %484 = vrot.lane.b32.xlu0 %v458, 127
        %v485 = vpop.permute.xlu0 %484
        %v488 = vsel %vm228, %v483, 0.0
        %v489 = vsel %vm228, %v485, 0.0
        %s490 = sld [smem:[#allocation2 + $0x1a]]
        %v491 = vstv %s490
        %v492 = vmul.f32 %v488, %v491
        %v493 = vmul.f32 %v489, %v491
        %v494 = vadd.f32 %v479, %v492
        %v495 = vadd.f32 %v480, %v493
        %498 = vrot.lane.b32.xlu0 %v447, 16
        %v499 = vpop.permute.xlu0 %498
        %500 = vrot.lane.b32.xlu0 %v448, 16
        %v501 = vpop.permute.xlu0 %500
        %506 = vrot.lane.b32.xlu0 %v463, 32
        %v507 = vpop.permute.xlu0 %506
        %508 = vrot.lane.b32.xlu0 %v464, 32
        %v509 = vpop.permute.xlu0 %508
        %514 = vrot.lane.b32.xlu0 %v494, 48
        %v515 = vpop.permute.xlu0 %514
        %516 = vrot.lane.b32.xlu0 %v495, 48
        %v517 = vpop.permute.xlu0 %516
        %v520 = vsel %vm309, %v427, %v499
        %v521 = vsel %vm309, %v428, %v501
        %v522 = vsel %vm312, %v520, %v507
        %v523 = vsel %vm312, %v521, %v509
        %v524 = vsel %vm315, %v522, %v515
        %v525 = vsel %vm315, %v523, %v517
        %s526 = scalar_lea.vmem %s209, 48
        %v527 = vld [vmem:[%s526] sm:$0xff]
        %v528 = vld [vmem:[%s526 + $0x8] sm:$0xff]
        %s529 = sld [smem:[#allocation2 + $0x1f]]
        %v530 = vstv %s529
        %v531 = vmul.f32 %v527, %v530
        %v532 = vmul.f32 %v528, %v530
        %s533 = sld [smem:[#allocation2 + $0x1e]]
        %v534 = vstv %s533
        %v535 = vmul.f32 %v527, %v534
        %v536 = vmul.f32 %v528, %v534
        %539 = vrot.lane.b32.xlu0 %v527, 127
        %v540 = vpop.permute.xlu0 %539
        %541 = vrot.lane.b32.xlu0 %v528, 127
        %v542 = vpop.permute.xlu0 %541
        %v545 = vsel %vm228, %v540, 0.0
        %v546 = vsel %vm228, %v542, 0.0
        %s547 = sld [smem:[#allocation2 + $0x20]]
        %v548 = vstv %s547
        %v549 = vmul.f32 %v545, %v548
        %v550 = vmul.f32 %v546, %v548
        %v551 = vadd.f32 %v535, %v549
        %v552 = vadd.f32 %v536, %v550
        %s553 = sld [smem:[#allocation2 + $0x1c]]
        %v554 = vstv %s553
        %v555 = vmul.f32 %v527, %v554
        %v556 = vmul.f32 %v528, %v554
        %v557 = vrot.slane %v527, 1
        %v558 = vrot.slane %v528, 1
        %v559 = vsel %vm241, %v557, %v558
        %v562 = vsel %vm241, %v558, 0.0
        %s563 = sld [smem:[#allocation2 + $0x22]]
        %v564 = vstv %s563
        %v565 = vmul.f32 %v559, %v564
        %v566 = vmul.f32 %v562, %v564
        %v567 = vadd.f32 %v555, %v565
        %v568 = vadd.f32 %v556, %v566
        %s569 = sld [smem:[#allocation2 + $0x1b]]
        %v570 = vstv %s569
        %v571 = vmul.f32 %v527, %v570
        %v572 = vmul.f32 %v528, %v570
        %s573 = sld [smem:[#allocation2 + $0x1d]]
        %v574 = vstv %s573
        %v575 = vmul.f32 %v545, %v574
        %v576 = vmul.f32 %v546, %v574
        %v577 = vadd.f32 %v571, %v575
        %v578 = vadd.f32 %v572, %v576
        %s579 = sld [smem:[#allocation2 + $0x21]]
        %v580 = vstv %s579
        %v581 = vmul.f32 %v559, %v580
        %v582 = vmul.f32 %v562, %v580
        %v583 = vadd.f32 %v577, %v581
        %v584 = vadd.f32 %v578, %v582
        %586 = vrot.lane.b32.xlu0 %v559, 127
        %v587 = vpop.permute.xlu0 %586
        %588 = vrot.lane.b32.xlu0 %v562, 127
        %v589 = vpop.permute.xlu0 %588
        %v592 = vsel %vm228, %v587, 0.0
        %v593 = vsel %vm228, %v589, 0.0
        %s594 = sld [smem:[#allocation2 + $0x23]]
        %v595 = vstv %s594
        %v596 = vmul.f32 %v592, %v595
        %v597 = vmul.f32 %v593, %v595
        %v598 = vadd.f32 %v583, %v596
        %v599 = vadd.f32 %v584, %v597
        %602 = vrot.lane.b32.xlu0 %v551, 16
        %v603 = vpop.permute.xlu0 %602
        %604 = vrot.lane.b32.xlu0 %v552, 16
        %v605 = vpop.permute.xlu0 %604
        %610 = vrot.lane.b32.xlu0 %v567, 32
        %v611 = vpop.permute.xlu0 %610
        %612 = vrot.lane.b32.xlu0 %v568, 32
        %v613 = vpop.permute.xlu0 %612
        %618 = vrot.lane.b32.xlu0 %v598, 48
        %v619 = vpop.permute.xlu0 %618
        %620 = vrot.lane.b32.xlu0 %v599, 48
        %v621 = vpop.permute.xlu0 %620
        %v624 = vsel %vm309, %v531, %v603
        %v625 = vsel %vm309, %v532, %v605
        %v626 = vsel %vm312, %v624, %v611
        %v627 = vsel %vm312, %v625, %v613
        %v628 = vsel %vm315, %v626, %v619
        %v629 = vsel %vm315, %v627, %v621
        %v630 = vld [vmem:[%s1] sm:$0xff]
        %v631 = vld [vmem:[%s1 + $0x8] sm:$0xff]
        %v632 = vld [vmem:[%s1 + $0x10] sm:$0xff]
        %v633 = vld [vmem:[%s1 + $0x18] sm:$0xff]
        %v634 = vld [vmem:[%s1 + $0x20] sm:$0xff]
        %v635 = vld [vmem:[%s1 + $0x28] sm:$0xff]
        %v636 = vld [vmem:[%s1 + $0x30] sm:$0xff]
        %v637 = vld [vmem:[%s1 + $0x38] sm:$0xff]
        %vm638 = vcmask 523264
        %v640 = vsel %vm638, %v316, 0
        %v643 = vsel %vm638, %v317, 0
        %v646 = vsel %vm638, %v420, 0
        %v649 = vsel %vm638, %v421, 0
        %v652 = vsel %vm638, %v524, 0
        %v655 = vsel %vm638, %v525, 0
        %v658 = vsel %vm638, %v628, 0
        %v661 = vsel %vm638, %v629, 0
        %663 = vmatprep.subr.mxu0 0.0
        %664 = vmatpush1.msra.mxu0 %v630
        %665 = vmatprep.subr.mxu0 0.0
        %666 = vmatpush1.msra.mxu0 %v631
        %667 = vmatprep.subr.mxu0 0.0
        %668 = vmatpush1.msra.mxu0 %v632
        %669 = vmatprep.subr.mxu0 0.0
        %670 = vmatpush1.msra.mxu0 %v633
        %671 = vmatprep.subr.mxu0 0.0
        %672 = vmatpush1.msra.mxu0 %v634
        %673 = vmatprep.subr.mxu0 0.0
        %674 = vmatpush1.msra.mxu0 %v635
        %675 = vmatprep.subr.mxu0 0.0
        %676 = vmatpush1.msra.mxu0 %v636
        %677 = vmatprep.subr.mxu0 0.0
        %678 = vmatpush1.msra.mxu0 %v637
        %679 = vmatprep.subr.mxu0 0.0
        %680 = vmatpush1.msra.mxu0 0.0
        %681 = vmatprep.subr.mxu0 0.0
        %682 = vmatpush1.msra.mxu0 0.0
        %683 = vmatprep.subr.mxu0 0.0
        %684 = vmatpush1.msra.mxu0 0.0
        %685 = vmatprep.subr.mxu0 0.0
        %686 = vmatpush1.msra.mxu0 0.0
        %687 = vmatprep.subr.mxu0 0.0
        %688 = vmatpush1.msra.mxu0 0.0
        %689 = vmatprep.subr.mxu0 0.0
        %690 = vmatpush1.msra.mxu0 0.0
        %691 = vmatprep.subr.mxu0 0.0
        %692 = vmatpush1.msra.mxu0 0.0
        %693 = vmatprep.subr.mxu0 0.0
        %694 = vmatpush1.msra.mxu0 0.0
        %695 = vmatprep.subr.mxu0 0.0
        %696 = vmatpush1.msra.mxu0 0.0
        %697 = vmatprep.subr.mxu0 0.0
        %698 = vmatpush1.msra.mxu0 0.0
        %699 = vmatprep.subr.mxu0 0.0
        %700 = vmatpush1.msra.mxu0 0.0
        %701 = vmatprep.subr.mxu0 0.0
        %702 = vmatpush1.msra.mxu0 0.0
        %703 = vmatprep.subr.mxu0 0.0
        %704 = vmatpush1.msra.mxu0 0.0
        %705 = vmatprep.subr.mxu0 0.0
        %706 = vmatpush1.msra.mxu0 0.0
        %707 = vmatprep.subr.mxu0 0.0
        %708 = vmatpush1.msra.mxu0 0.0
        %709 = vmatprep.subr.mxu0 0.0
        %710 = vmatpush1.msra.mxu0 0.0
        %711 = vmatprep.subr.mxu0 0.0
        %712 = vmatpush1.msra.mxu0 0.0
        %713 = vmatprep.subr.mxu0 0.0
        %714 = vmatpush1.msra.mxu0 0.0
        %715 = vmatprep.subr.mxu0 0.0
        %716 = vmatpush1.msra.mxu0 0.0
        %717 = vmatprep.subr.mxu0 0.0
        %718 = vmatpush1.msra.mxu0 0.0
        %719 = vmatprep.subr.mxu0 0.0
        %720 = vmatpush1.msra.mxu0 0.0
        %721 = vmatprep.subr.mxu0 0.0
        %722 = vmatpush1.msra.mxu0 0.0
        %723 = vmatprep.subr.mxu0 0.0
        %724 = vmatpush1.msra.mxu0 0.0
        %725 = vmatprep.subr.mxu0 0.0
        %726 = vmatpush1.msra.mxu0 0.0
        %727 = vmatprep.mubr.f32.mxu0 0.0
        %728 = vmatmul.mubr.f32.gmra.mrb[0].mxu0 %v640
        %v729 = vpop.f32.mrb[0].mxu0
        %v730 = vadd.f32 0.0, %v729
        %v731 = vpop.f32.mrb[0].mxu0
        %732 = vmatprep.mubr.f32.mxu0 0.0
        %733 = vmatmul.mubr.f32.gmra.mrb[0].mxu0 %v643
        %v734 = vpop.f32.mrb[0].mxu0
        %v735 = vadd.f32 0.0, %v734
        %v736 = vpop.f32.mrb[0].mxu0
        %737 = vmatprep.mubr.f32.mxu0 0.0
        %738 = vmatmul.mubr.f32.gmra.mrb[0].mxu0 %v646
        %v739 = vpop.f32.mrb[0].mxu0
        %v740 = vadd.f32 0.0, %v739
        %v741 = vpop.f32.mrb[0].mxu0
        %742 = vmatprep.mubr.f32.mxu0 0.0
        %743 = vmatmul.mubr.f32.gmra.mrb[0].mxu0 %v649
        %v744 = vpop.f32.mrb[0].mxu0
        %v745 = vadd.f32 0.0, %v744
        %v746 = vpop.f32.mrb[0].mxu0
        %747 = vmatprep.mubr.f32.mxu0 0.0
        %748 = vmatmul.mubr.f32.gmra.mrb[0].mxu0 %v652
        %v749 = vpop.f32.mrb[0].mxu0
        %v750 = vadd.f32 0.0, %v749
        %v751 = vpop.f32.mrb[0].mxu0
        %752 = vmatprep.mubr.f32.mxu0 0.0
        %753 = vmatmul.mubr.f32.gmra.mrb[0].mxu0 %v655
        %v754 = vpop.f32.mrb[0].mxu0
        %v755 = vadd.f32 0.0, %v754
        %v756 = vpop.f32.mrb[0].mxu0
        %757 = vmatprep.mubr.f32.mxu0 0.0
        %758 = vmatmul.mubr.f32.gmra.mrb[0].mxu0 %v658
        %v759 = vpop.f32.mrb[0].mxu0
        %v760 = vadd.f32 0.0, %v759
        %v761 = vpop.f32.mrb[0].mxu0
        %762 = vmatprep.mubr.f32.mxu0 0.0
        %763 = vmatmul.mubr.f32.gmra.mrb[0].mxu0 %v661
        %v764 = vpop.f32.mrb[0].mxu0
        %v765 = vadd.f32 0.0, %v764
        %v766 = vpop.f32.mrb[0].mxu0
        %767 = vdwg.mxu0
        %v768 = vld [vmem:[%s2] sm:$0xff]
        %v769 = vld [vmem:[%s2 + $0x8] sm:$0xff]
        %v770 = vld [vmem:[%s2 + $0x10] sm:$0xff]
        %v771 = vld [vmem:[%s2 + $0x18] sm:$0xff]
        %v772 = vld [vmem:[%s2 + $0x20] sm:$0xff]
        %v773 = vld [vmem:[%s2 + $0x28] sm:$0xff]
        %v774 = vld [vmem:[%s2 + $0x30] sm:$0xff]
        %v775 = vld [vmem:[%s2 + $0x38] sm:$0xff]
        %v776 = vld [vmem:[%s2 + $0x40] sm:$0xff]
        %v777 = vld [vmem:[%s2 + $0x48] sm:$0xff]
        %v778 = vld [vmem:[%s2 + $0x50] sm:$0xff]
        %v779 = vld [vmem:[%s2 + $0x58] sm:$0xff]
        %v780 = vld [vmem:[%s2 + $0x60] sm:$0xff]
        %v781 = vld [vmem:[%s2 + $0x68] sm:$0xff]
        %v782 = vld [vmem:[%s2 + $0x70] sm:$0xff]
        %v783 = vld [vmem:[%s2 + $0x78] sm:$0xff]
        %v785 = vsel %vm638, %v768, 0
        %v788 = vsel %vm638, %v769, 0
        %v791 = vsel %vm638, %v770, 0
        %v794 = vsel %vm638, %v771, 0
        %v797 = vsel %vm638, %v772, 0
        %v800 = vsel %vm638, %v773, 0
        %v803 = vsel %vm638, %v774, 0
        %v806 = vsel %vm638, %v775, 0
        %v809 = vsel %vm638, %v776, 0
        %v812 = vsel %vm638, %v777, 0
        %v815 = vsel %vm638, %v778, 0
        %v818 = vsel %vm638, %v779, 0
        %v821 = vsel %vm638, %v780, 0
        %v824 = vsel %vm638, %v781, 0
        %v827 = vsel %vm638, %v782, 0
        %v830 = vsel %vm638, %v783, 0
        %832 = vmatprep.subr.mxu0 0.0
        %833 = vmatpush1.msra.mxu0 %v730
        %834 = vmatprep.subr.mxu0 0.0
        %835 = vmatpush1.msra.mxu0 %v735
        %836 = vmatprep.subr.mxu0 0.0
        %837 = vmatpush1.msra.mxu0 %v740
        %838 = vmatprep.subr.mxu0 0.0
        %839 = vmatpush1.msra.mxu0 %v745
        %840 = vmatprep.subr.mxu0 0.0
        %841 = vmatpush1.msra.mxu0 %v750
        %842 = vmatprep.subr.mxu0 0.0
        %843 = vmatpush1.msra.mxu0 %v755
        %844 = vmatprep.subr.mxu0 0.0
        %845 = vmatpush1.msra.mxu0 %v760
        %846 = vmatprep.subr.mxu0 0.0
        %847 = vmatpush1.msra.mxu0 %v765
        %848 = vmatprep.subr.mxu0 0.0
        %849 = vmatpush1.msra.mxu0 0.0
        %850 = vmatprep.subr.mxu0 0.0
        %851 = vmatpush1.msra.mxu0 0.0
        %852 = vmatprep.subr.mxu0 0.0
        %853 = vmatpush1.msra.mxu0 0.0
        %854 = vmatprep.subr.mxu0 0.0
        %855 = vmatpush1.msra.mxu0 0.0
        %856 = vmatprep.subr.mxu0 0.0
        %857 = vmatpush1.msra.mxu0 0.0
        %858 = vmatprep.subr.mxu0 0.0
        %859 = vmatpush1.msra.mxu0 0.0
        %860 = vmatprep.subr.mxu0 0.0
        %861 = vmatpush1.msra.mxu0 0.0
        %862 = vmatprep.subr.mxu0 0.0
        %863 = vmatpush1.msra.mxu0 0.0
        %864 = vmatprep.subr.mxu0 0.0
        %865 = vmatpush1.msra.mxu0 0.0
        %866 = vmatprep.subr.mxu0 0.0
        %867 = vmatpush1.msra.mxu0 0.0
        %868 = vmatprep.subr.mxu0 0.0
        %869 = vmatpush1.msra.mxu0 0.0
        %870 = vmatprep.subr.mxu0 0.0
        %871 = vmatpush1.msra.mxu0 0.0
        %872 = vmatprep.subr.mxu0 0.0
        %873 = vmatpush1.msra.mxu0 0.0
        %874 = vmatprep.subr.mxu0 0.0
        %875 = vmatpush1.msra.mxu0 0.0
        %876 = vmatprep.subr.mxu0 0.0
        %877 = vmatpush1.msra.mxu0 0.0
        %878 = vmatprep.subr.mxu0 0.0
        %879 = vmatpush1.msra.mxu0 0.0
        %880 = vmatprep.subr.mxu0 0.0
        %881 = vmatpush1.msra.mxu0 0.0
        %882 = vmatprep.subr.mxu0 0.0
        %883 = vmatpush1.msra.mxu0 0.0
        %884 = vmatprep.subr.mxu0 0.0
        %885 = vmatpush1.msra.mxu0 0.0
        %886 = vmatprep.subr.mxu0 0.0
        %887 = vmatpush1.msra.mxu0 0.0
        %888 = vmatprep.subr.mxu0 0.0
        %889 = vmatpush1.msra.mxu0 0.0
        %890 = vmatprep.subr.mxu0 0.0
        %891 = vmatpush1.msra.mxu0 0.0
        %892 = vmatprep.subr.mxu0 0.0
        %893 = vmatpush1.msra.mxu0 0.0
        %894 = vmatprep.subr.mxu0 0.0
        %895 = vmatpush1.msra.mxu0 0.0
        %896 = vmatprep.mubr.f32.mxu0 0.0
        %897 = vmatmul.mubr.f32.gmra.mrb[0].mxu0 %v785
        %v898 = vpop.f32.mrb[0].mxu0
        %v899 = vadd.f32 0.0, %v898
        %v900 = vpop.f32.mrb[0].mxu0
        %901 = vmatprep.mubr.f32.mxu0 0.0
        %902 = vmatmul.mubr.f32.gmra.mrb[0].mxu0 %v788
        %v903 = vpop.f32.mrb[0].mxu0
        %v904 = vadd.f32 0.0, %v903
        %v905 = vpop.f32.mrb[0].mxu0
        %906 = vmatprep.mubr.f32.mxu0 0.0
        %907 = vmatmul.mubr.f32.gmra.mrb[0].mxu0 %v791
        %v908 = vpop.f32.mrb[0].mxu0
        %v909 = vadd.f32 0.0, %v908
        %v910 = vpop.f32.mrb[0].mxu0
        %911 = vmatprep.mubr.f32.mxu0 0.0
        %912 = vmatmul.mubr.f32.gmra.mrb[0].mxu0 %v794
        %v913 = vpop.f32.mrb[0].mxu0
        %v914 = vadd.f32 0.0, %v913
        %v915 = vpop.f32.mrb[0].mxu0
        %916 = vmatprep.mubr.f32.mxu0 0.0
        %917 = vmatmul.mubr.f32.gmra.mrb[0].mxu0 %v797
        %v918 = vpop.f32.mrb[0].mxu0
        %v919 = vadd.f32 0.0, %v918
        %v920 = vpop.f32.mrb[0].mxu0
        %921 = vmatprep.mubr.f32.mxu0 0.0
        %922 = vmatmul.mubr.f32.gmra.mrb[0].mxu0 %v800
        %v923 = vpop.f32.mrb[0].mxu0
        %v924 = vadd.f32 0.0, %v923
        %v925 = vpop.f32.mrb[0].mxu0
        %926 = vmatprep.mubr.f32.mxu0 0.0
        %927 = vmatmul.mubr.f32.gmra.mrb[0].mxu0 %v803
        %v928 = vpop.f32.mrb[0].mxu0
        %v929 = vadd.f32 0.0, %v928
        %v930 = vpop.f32.mrb[0].mxu0
        %931 = vmatprep.mubr.f32.mxu0 0.0
        %932 = vmatmul.mubr.f32.gmra.mrb[0].mxu0 %v806
        %v933 = vpop.f32.mrb[0].mxu0
        %v934 = vadd.f32 0.0, %v933
        %v935 = vpop.f32.mrb[0].mxu0
        %936 = vmatprep.mubr.f32.mxu0 0.0
        %937 = vmatmul.mubr.f32.gmra.mrb[0].mxu0 %v809
        %v938 = vpop.f32.mrb[0].mxu0
        %v939 = vadd.f32 0.0, %v938
        %v940 = vpop.f32.mrb[0].mxu0
        %941 = vmatprep.mubr.f32.mxu0 0.0
        %942 = vmatmul.mubr.f32.gmra.mrb[0].mxu0 %v812
        %v943 = vpop.f32.mrb[0].mxu0
        %v944 = vadd.f32 0.0, %v943
        %v945 = vpop.f32.mrb[0].mxu0
        %946 = vmatprep.mubr.f32.mxu0 0.0
        %947 = vmatmul.mubr.f32.gmra.mrb[0].mxu0 %v815
        %v948 = vpop.f32.mrb[0].mxu0
        %v949 = vadd.f32 0.0, %v948
        %v950 = vpop.f32.mrb[0].mxu0
        %951 = vmatprep.mubr.f32.mxu0 0.0
        %952 = vmatmul.mubr.f32.gmra.mrb[0].mxu0 %v818
        %v953 = vpop.f32.mrb[0].mxu0
        %v954 = vadd.f32 0.0, %v953
        %v955 = vpop.f32.mrb[0].mxu0
        %956 = vmatprep.mubr.f32.mxu0 0.0
        %957 = vmatmul.mubr.f32.gmra.mrb[0].mxu0 %v821
        %v958 = vpop.f32.mrb[0].mxu0
        %v959 = vadd.f32 0.0, %v958
        %v960 = vpop.f32.mrb[0].mxu0
        %961 = vmatprep.mubr.f32.mxu0 0.0
        %962 = vmatmul.mubr.f32.gmra.mrb[0].mxu0 %v824
        %v963 = vpop.f32.mrb[0].mxu0
        %v964 = vadd.f32 0.0, %v963
        %v965 = vpop.f32.mrb[0].mxu0
        %966 = vmatprep.mubr.f32.mxu0 0.0
        %967 = vmatmul.mubr.f32.gmra.mrb[0].mxu0 %v827
        %v968 = vpop.f32.mrb[0].mxu0
        %v969 = vadd.f32 0.0, %v968
        %v970 = vpop.f32.mrb[0].mxu0
        %971 = vmatprep.mubr.f32.mxu0 0.0
        %972 = vmatmul.mubr.f32.gmra.mrb[0].mxu0 %v830
        %v973 = vpop.f32.mrb[0].mxu0
        %v974 = vadd.f32 0.0, %v973
        %v975 = vpop.f32.mrb[0].mxu0
        %976 = vdwg.mxu0
        %977 = vst.msk [vmem:[%s204] sm:$0xff] %vm638, %v899
        %978 = vst.msk [vmem:[%s204 + $0x8] sm:$0xff] %vm638, %v904
        %979 = vst.msk [vmem:[%s204 + $0x10] sm:$0xff] %vm638, %v909
        %980 = vst.msk [vmem:[%s204 + $0x18] sm:$0xff] %vm638, %v914
        %981 = vst.msk [vmem:[%s204 + $0x20] sm:$0xff] %vm638, %v919
        %982 = vst.msk [vmem:[%s204 + $0x28] sm:$0xff] %vm638, %v924
        %983 = vst.msk [vmem:[%s204 + $0x30] sm:$0xff] %vm638, %v929
        %984 = vst.msk [vmem:[%s204 + $0x38] sm:$0xff] %vm638, %v934
        %985 = vst.msk [vmem:[%s204 + $0x40] sm:$0xff] %vm638, %v939
        %986 = vst.msk [vmem:[%s204 + $0x48] sm:$0xff] %vm638, %v944
        %987 = vst.msk [vmem:[%s204 + $0x50] sm:$0xff] %vm638, %v949
        %988 = vst.msk [vmem:[%s204 + $0x58] sm:$0xff] %vm638, %v954
        %989 = vst.msk [vmem:[%s204 + $0x60] sm:$0xff] %vm638, %v959
        %990 = vst.msk [vmem:[%s204 + $0x68] sm:$0xff] %vm638, %v964
        %991 = vst.msk [vmem:[%s204 + $0x70] sm:$0xff] %vm638, %v969
        %992 = vst.msk [vmem:[%s204 + $0x78] sm:$0xff] %vm638, %v974
        %s993 = sand.u32 %s116, 1
        %s994 = scalar_lea.sflag [#allocation3], %s993
        %s995 = sand.u32 %s116, 1
        %s996 = smul.addr %s995, 128
        %s997 = scalar_lea.vmem [#allocation5], %s996
        // Predicated region
        $region41: #{tpu_custom_call.1} parent=35 // pred_check
          %p998 = pneg %p126
        $region42: #{tpu_custom_call.1} parent=35 // pred_check_branch
          %1000 = sbr.rel (%p998) target = $region44
        $region43: #{tpu_custom_call.1} parent=35 // pred_region
          %s1002 = ssub.s32 2048, 2048
          %1003 = vsyncadd %s994, %s1002
          %s1004 = smul.addr %s19, 16
          %s1005 = smul.addr %s1004, 128
          %s1006 = scalar_lea.hbm %s4, %s1005
          %s1007 = sshll.u32 %s997, 4
          %s1008 = int_to_ptr.vmem [resolvable:$true] %s1007
          %1013 = dma.vmem_to_hbm [thread:$0]  %s1008, 2048, %s1006, %s994, 128, 128, 8
        $region44: #{tpu_custom_call.1} parent=35 // pred_fallthru
          _
      $region36: #{tpu_custom_call.1} parent=5 // pred_fallthru
        _
      %p1014 = scmp.le.s32.totalorder 2, %s14
      // Predicated region
      $region45: #{tpu_custom_call.1} parent=5 // pred_check
        %p1015 = pneg %p1014
      $region46: #{tpu_custom_call.1} parent=5 // pred_check_branch
        %1017 = sbr.rel (%p1015) target = $region48
      $region47: #{tpu_custom_call.1} parent=5 // pred_region
        %s1018 = ssub.s32 %s14, 2
        // Predicated region
        $region49: #{tpu_custom_call.1} parent=47 // pred_check
          %p1019 = pneg %p132
        $region50: #{tpu_custom_call.1} parent=47 // pred_check_branch
          %1021 = sbr.rel (%p1019) target = $region52
        $region51: #{tpu_custom_call.1} parent=47 // pred_region
          %s1022 = sand.u32 %s117, 1
          %s1023 = scalar_lea.sflag [#allocation3], %s1022
          %s1024 = sand.u32 %s117, 1
          %s1025 = smul.addr %s1024, 128
          %s1026 = scalar_lea.vmem [#allocation5], %s1025
          %1027 = dma.done %s1023, 2048
        $region52: #{tpu_custom_call.1} parent=47 // pred_fallthru
          _
      $region48: #{tpu_custom_call.1} parent=5 // pred_fallthru
        _
    $region6: #{tpu_custom_call.1} parent=1 // loop_footer
      %s18 = sadd.s32 1, %s14
    $region7: #{tpu_custom_call.1} parent=1 // loop_footer_branch
      %13 = sbr.rel target = $region3
    $region8: #{tpu_custom_call.1} parent=1 // loop_exit
      _
    %1028 = vsyncpa [#allocation3], 1
    %s1029 = scalar_lea.sflag [#allocation3], 1
    %1030 = vsyncpa %s1029, 1
    %1031 = vsyncpa [#allocation4], 1
    %s1032 = scalar_lea.sflag [#allocation4], 1
    %1033 = vsyncpa %s1032, 1

</llo_original>
